<compile_context>
chip_gen: v5e
topology: v5e:2x2
jax: 0.10.0
libtpu: 0.0.40
codegen_flags: <defaults>
</compile_context>

<pallas_src>
import functools

import jax
import jax.numpy as jnp
from jax.experimental import pallas as pl
from jax.experimental.pallas import tpu as pltpu


# --------------------------------------------------------------------------
# Kernels
# --------------------------------------------------------------------------
def _res_block_proj_kernel(x_ref, w1s_ref, b1_ref, w2_ref, b2s_ref, o_ref, *,
                           d_hidden_p):
    # x tile : (tm, d_in)          bf16
    # w1s    : (d_in, Hp + Op)     == [W1 | Ws]  (BN-folded, bf16)
    # w2     : (Hp, Op)            bf16
    # biases : f32,  b2s = b2 + bs
    x = x_ref[...]
    xw = jnp.dot(x, w1s_ref[...], preferred_element_type=jnp.float32)
    h = jnp.maximum(xw[:, :d_hidden_p] + b1_ref[...], 0.0)   # lane-aligned slice
    shortcut = xw[:, d_hidden_p:]
    y = jnp.dot(h.astype(w2_ref.dtype), w2_ref[...],
                preferred_element_type=jnp.float32)
    o_ref[...] = (y + shortcut + b2s_ref[...]).astype(o_ref.dtype)


def _res_block_id_kernel(x_ref, w1_ref, b1_ref, w2_ref, b2_ref, o_ref):
    # identity shortcut (d_in == d_out); residual added in f32.
    x = x_ref[...]
    h = jnp.dot(x, w1_ref[...], preferred_element_type=jnp.float32) + b1_ref[...]
    h = jnp.maximum(h, 0.0)
    y = jnp.dot(h.astype(w2_ref.dtype), w2_ref[...],
                preferred_element_type=jnp.float32) + b2_ref[...]
    o_ref[...] = (y + x.astype(jnp.float32)).astype(o_ref.dtype)


# --------------------------------------------------------------------------
# Wrapper helpers
# --------------------------------------------------------------------------
def _round_up(n, k):
    return (n + k - 1) // k * k


def _pad_to(a, shape):
    pads = [(0, t - s) for s, t in zip(a.shape, shape)]
    if all(p == (0, 0) for p in pads):
        return a
    return jnp.pad(a, pads)


def _vmem_budget():
    """(tile-sizing budget, compiler vmem limit) per TPU generation."""
    try:
        cap = int(pltpu.get_tpu_info().vmem_capacity_bytes)
    except Exception:  # pragma: no cover - conservative fallback
        cap = 64 * 1024 * 1024
    if cap >= 100 * 1024 * 1024:          # v5e / v6e: 128 MiB physical VMEM
        return 64 * 1024 * 1024, 100 * 1024 * 1024
    return 28 * 1024 * 1024, 48 * 1024 * 1024   # v7x: 64 MiB physical VMEM


def _pick_batch_tile(m, per_row_bytes, weight_bytes, budget):
    """Largest sublane-aligned batch tile fitting the VMEM budget."""
    avail = max(budget - weight_bytes, per_row_bytes * 8)
    tm = avail // max(per_row_bytes, 1)
    tm = min(int(tm), 4096, m)
    # v7x megacore: keep >= 2 batch tiles so the "parallel" axis shards over both TCs.
    if m >= 16:
        tm = min(tm, pl.cdiv(m, 2))
    if tm < m:
        tm = max((tm // 8) * 8, 8)
        # Prefer a tile that divides m (no ragged last tile / masked stores),
        # but never shrink below half of the budget-optimal tile.
        if m % tm != 0:
            for cand in range(tm, max(tm // 2, 7), -8):
                if m % cand == 0:
                    tm = cand
                    break
    return max(min(tm, m), 1)


# --------------------------------------------------------------------------
# Forward wrapper
# --------------------------------------------------------------------------
def res_linear_block_forward(x, w1, b1, w2, b2, ws=None, bs=None, *,
                             batch_tile=None, compute_dtype=jnp.bfloat16):
    """Fused ResLinearBlock forward (eval-mode BN already folded into weights).

    w1: (d_in, d_hidden)   b1: (d_hidden,)
    w2: (d_hidden, d_out)  b2: (d_out,)
    ws: (d_in, d_out)/None bs: (d_out,)/None   (None => identity shortcut)

    MXU operands run in `compute_dtype` (bf16 by default) with f32 accumulation;
    biases and the epilogue (relu / residual) stay in f32.
    """
    m, d_in = x.shape
    d_hidden = w1.shape[1]
    d_out = w2.shape[1]
    has_proj = ws is not None
    if not has_proj and d_in != d_out:
        raise ValueError("identity shortcut requires d_in == d_out")

    out_dtype = x.dtype
    cdt = jnp.dtype(compute_dtype)
    acc_bytes = 4
    budget, vmem_limit = _vmem_budget()

    if has_proj:
        d_hid_p = _round_up(d_hidden, 128)
        d_out_p = _round_up(d_out, 128)
        # One MXU pass for both x-contractions: x @ [W1 | Ws].
        w1s = jnp.concatenate(
            [_pad_to(w1.astype(jnp.float32), (d_in, d_hid_p)),
             _pad_to(ws.astype(jnp.float32), (d_in, d_out_p))], axis=1).astype(cdt)
        w2p = _pad_to(w2.astype(jnp.float32), (d_hid_p, d_out_p)).astype(cdt)
        b1p = _pad_to(b1.astype(jnp.float32).reshape(1, d_hidden), (1, d_hid_p))
        b2s = _pad_to((b2.astype(jnp.float32) + bs.astype(jnp.float32))
                      .reshape(1, d_out), (1, d_out_p))
        x_k = x.astype(cdt)
        d_in_k = d_in
        kernel = functools.partial(_res_block_proj_kernel, d_hidden_p=d_hid_p)
        weights = [(w1s, (d_in, d_hid_p + d_out_p)),
                   (b1p, (1, d_hid_p)),
                   (w2p, (d_hid_p, d_out_p)),
                   (b2s, (1, d_out_p))]
        weight_bytes = ((w1s.size + w2p.size) * cdt.itemsize
                        + (b1p.size + b2s.size) * acc_bytes)
        per_row = (2 * d_in * cdt.itemsize            # x tile (double-buffered)
                   + 2 * d_out_p * out_dtype.itemsize  # out tile (double-buffered)
                   + (d_hid_p + d_out_p) * acc_bytes   # xw intermediate
                   + d_hid_p * cdt.itemsize)           # h in bf16
        flops = 2 * m * (d_in * (d_hid_p + d_out_p) + d_hid_p * d_out_p)
    else:
        d_p = _round_up(d_out, 128)
        x_k = _pad_to(x.astype(cdt), (m, d_p))
        w1p = _pad_to(w1.astype(jnp.float32), (d_p, d_hidden)).astype(cdt)
        w2p = _pad_to(w2.astype(jnp.float32), (d_hidden, d_p)).astype(cdt)
        b1p = b1.astype(jnp.float32).reshape(1, d_hidden)
        b2p = _pad_to(b2.astype(jnp.float32).reshape(1, d_out), (1, d_p))
        d_in_k = d_p
        d_out_p = d_p
        kernel = _res_block_id_kernel
        weights = [(w1p, (d_p, d_hidden)),
                   (b1p, (1, d_hidden)),
                   (w2p, (d_hidden, d_p)),
                   (b2p, (1, d_p))]
        weight_bytes = ((w1p.size + w2p.size) * cdt.itemsize
                        + (b1p.size + b2p.size) * acc_bytes)
        per_row = (2 * d_p * cdt.itemsize + 2 * d_p * out_dtype.itemsize
                   + d_hidden * (acc_bytes + cdt.itemsize) + d_p * acc_bytes)
        flops = 2 * m * (d_p * d_hidden + d_hidden * d_p)

    if batch_tile is not None:
        tm = max(min(int(batch_tile), m), 1)
    else:
        tm = _pick_batch_tile(m, per_row, weight_bytes, budget)
    grid = (pl.cdiv(m, tm),)

    x_spec = pl.BlockSpec((tm, d_in_k), lambda i: (i, 0))
    o_spec = pl.BlockSpec((tm, d_out_p), lambda i: (i, 0))

    bytes_accessed = int(m * d_in_k * cdt.itemsize
                         + m * d_out_p * out_dtype.itemsize + weight_bytes)
    cost = pl.CostEstimate(flops=int(flops), transcendentals=0,
                           bytes_accessed=bytes_accessed)
    cparams = pltpu.CompilerParams(
        dimension_semantics=("parallel",),   # batch tiles shard across TCs
        vmem_limit_bytes=vmem_limit)

    def run(single_buffer_weights):
        # Constant-index_map blocks are fetched once; single-buffering them
        # halves their VMEM footprint (no pipelining benefit to lose).
        if single_buffer_weights:
            def w_spec(shp):
                return pl.BlockSpec(shp, lambda i: (0, 0),
                                    pipeline_mode=pl.Buffered(1))
        else:
            def w_spec(shp):
                return pl.BlockSpec(shp, lambda i: (0, 0))
        in_specs = [x_spec] + [w_spec(shp) for _, shp in weights]
        return pl.pallas_call(
            kernel,
            out_shape=jax.ShapeDtypeStruct((m, d_out_p), out_dtype),
            grid=grid,
            in_specs=in_specs,
            out_specs=o_spec,
            compiler_params=cparams,
            cost_estimate=cost,
        )(x_k, *[a for a, _ in weights])

    try:
        out = run(True)
    except Exception:  # pragma: no cover - fallback if Buffered(1) unsupported
        out = run(False)

    return out[:, :d_out] if d_out_p != d_out else out


# --------------------------------------------------------------------------
# Parameter construction (PyTorch-like init) + BN folding (done in f32)
# --------------------------------------------------------------------------
def _init_linear(key, fan_in, fan_out, dtype):
    kw, kb = jax.random.split(key)
    bound = float(fan_in) ** -0.5
    w = jax.random.uniform(kw, (fan_in, fan_out), dtype, -bound, bound)
    b = jax.random.uniform(kb, (fan_out,), dtype, -bound, bound)
    return w, b


def _init_bn(key, d, dtype):
    k1, k2, k3, k4 = jax.random.split(key, 4)
    gamma = 1.0 + 0.1 * jax.random.normal(k1, (d,), dtype)
    beta = 0.1 * jax.random.normal(k2, (d,), dtype)
    mean = 0.1 * jax.random.normal(k3, (d,), dtype)
    var = jax.random.uniform(k4, (d,), dtype, 0.5, 1.5)
    return gamma, beta, mean, var


def _fold_bn(w, b, gamma, beta, mean, var, eps):
    # BN(x @ W + b) == x @ (W * s) + (b - mean) * s + beta,  s = gamma/sqrt(var+eps)
    # Folding is done in f32; the wrapper downcasts the folded weights (not the
    # scale computation) to the MXU compute dtype.
    scale = gamma.astype(jnp.float32) / jnp.sqrt(var.astype(jnp.float32) + eps)
    wf = w.astype(jnp.float32) * scale[None, :]
    bf = (b.astype(jnp.float32) - mean.astype(jnp.float32)) * scale \
        + beta.astype(jnp.float32)
    return wf, bf


class ResLinearBlockPallas:
    """Inference-mode mirror of the PyTorch ResLinearBlock (BN folded, bf16 MXU)."""

    def __init__(self, d_in, d_out, d_hidden, key, dtype=jnp.float32, eps=1e-5):
        keys = jax.random.split(key, 6)
        self.d_in, self.d_out, self.d_hidden, self.eps = d_in, d_out, d_hidden, eps

        w1, b1 = _init_linear(keys[0], d_in, d_hidden, dtype)
        bn1 = _init_bn(keys[1], d_hidden, dtype)
        w2, b2 = _init_linear(keys[2], d_hidden, d_out, dtype)
        bn2 = _init_bn(keys[3], d_out, dtype)
        self.raw = dict(w1=w1, b1=b1, bn1=bn1, w2=w2, b2=b2, bn2=bn2)

        self.w1, self.b1 = _fold_bn(w1, b1, *bn1, eps)
        self.w2, self.b2 = _fold_bn(w2, b2, *bn2, eps)

        if d_in != d_out:
            ws, bs = _init_linear(keys[4], d_in, d_out, dtype)
            bns = _init_bn(keys[5], d_out, dtype)
            self.raw.update(ws=ws, bs=bs, bns=bns)
            self.ws, self.bs = _fold_bn(ws, bs, *bns, eps)
        else:
            self.ws = self.bs = None

    def __call__(self, x, *, batch_tile=None, compute_dtype=jnp.bfloat16):
        return res_linear_block_forward(x, self.w1, self.b1, self.w2, self.b2,
                                        self.ws, self.bs, batch_tile=batch_tile,
                                        compute_dtype=compute_dtype)

    def reference(self, x):
        """Unfused pure-JAX reference (eval-mode BatchNorm), highest precision."""
        p = self.raw
        hp = jax.lax.Precision.HIGHEST

        def bn(z, params):
            gamma, beta, mean, var = params
            return (z - mean) / jnp.sqrt(var + self.eps) * gamma + beta

        h = bn(jnp.dot(x, p["w1"], precision=hp) + p["b1"], p["bn1"])
        h = jnp.maximum(h, 0.0)
        y = bn(jnp.dot(h, p["w2"], precision=hp) + p["b2"], p["bn2"])
        if "ws" in p:
            y = y + bn(jnp.dot(x, p["ws"], precision=hp) + p["bs"], p["bns"])
        else:
            y = y + x
        return y


# --------------------------------------------------------------------------
# Self-test
# --------------------------------------------------------------------------
if __name__ == "__main__":
    key = jax.random.PRNGKey(0)
    k_x1, k_x2, k_m1, k_m2 = jax.random.split(key, 4)

    # Case 1: d_in != d_out -> projection shortcut (Linear + BN); exercises the
    # concatenated x @ [W1 | Ws] matmul and 128-lane padding of hidden/out dims.
    batch, d_in, d_hidden, d_out = 64, 32, 96, 80
    x1 = jax.random.normal(k_x1, (batch, d_in), dtype=jnp.float32)
    mod1 = ResLinearBlockPallas(d_in, d_out, d_hidden, k_m1)
    y1 = mod1(x1)
    jax.block_until_ready(y1)
    ref1 = mod1.reference(x1)
    assert y1.shape == (batch, d_out) and y1.dtype == x1.dtype
    err1 = float(jnp.max(jnp.abs(y1 - ref1)))
    assert jnp.allclose(y1, ref1, rtol=2e-2, atol=2e-2), err1

    # Case 2: d_in == d_out -> identity shortcut; exercises batch tiling
    # (grid of 2) and the padded-identity path (d_out % 128 != 0).
    x2 = jax.random.normal(k_x2, (48, 64), dtype=jnp.float32)
    mod2 = ResLinearBlockPallas(64, 64, 32, k_m2)
    y2 = mod2(x2)
    jax.block_until_ready(y2)
    ref2 = mod2.reference(x2)
    assert y2.shape == (48, 64) and y2.dtype == x2.dtype
    err2 = float(jnp.max(jnp.abs(y2 - ref2)))
    assert jnp.allclose(y2, ref2, rtol=2e-2, atol=2e-2), err2

    print("KERNEL_OK")
</pallas_src>

<mosaic_0001>
module attributes {stable_mosaic.version = 11 : i64} {
  func.func @_res_block_proj_kernel(%arg0: i32, %arg1: memref<32x32xbf16, #tpu.memory_space<vmem>>, %arg2: memref<32x256xbf16, #tpu.memory_space<vmem>>, %arg3: memref<1x128xf32, #tpu.memory_space<vmem>>, %arg4: memref<128x128xbf16, #tpu.memory_space<vmem>>, %arg5: memref<1x128xf32, #tpu.memory_space<vmem>>, %arg6: memref<32x128xf32, #tpu.memory_space<vmem>>) attributes {dimension_semantics = [#tpu.dimension_semantics<parallel>], iteration_bounds = array<i64: 2>, scalar_prefetch = 0 : i64, scratch_operands = 0 : i64, tpu.core_type = #tpu.core_type<tc>, window_params = [{transform_indices = @transform_0, window_bounds = array<i64: 32, 32>}, {pipeline_mode = #tpu.pipeline_mode<synchronous>, transform_indices = @transform_1, window_bounds = array<i64: 32, 256>}, {pipeline_mode = #tpu.pipeline_mode<synchronous>, transform_indices = @transform_2, window_bounds = array<i64: 1, 128>}, {pipeline_mode = #tpu.pipeline_mode<synchronous>, transform_indices = @transform_3, window_bounds = array<i64: 128, 128>}, {pipeline_mode = #tpu.pipeline_mode<synchronous>, transform_indices = @transform_4, window_bounds = array<i64: 1, 128>}, {transform_indices = @transform_5, window_bounds = array<i64: 32, 128>}]} {
    %c0 = arith.constant 0 : index
    %c0_0 = arith.constant 0 : index
    %0 = vector.load %arg1[%c0, %c0_0] : memref<32x32xbf16, #tpu.memory_space<vmem>>, vector<32x32xbf16>
    %c0_1 = arith.constant 0 : index
    %c0_2 = arith.constant 0 : index
    %1 = vector.load %arg2[%c0_1, %c0_2] : memref<32x256xbf16, #tpu.memory_space<vmem>>, vector<32x256xbf16>
    %cst = arith.constant dense<0.000000e+00> : vector<32x256xf32>
    %2 = tpu.matmul %0, %1, %cst {dimension_numbers = #tpu.dot_dimension_numbers<[1], [0], [0], [1], [0, 0, 1, 1], [], []>} : vector<32x32xbf16>, vector<32x256xbf16>, vector<32x256xf32> -> vector<32x256xf32>
    %3 = vector.extract_strided_slice %2 {offsets = [0, 0], sizes = [32, 128], strides = [1, 1]} : vector<32x256xf32> to vector<32x128xf32>
    %c0_3 = arith.constant 0 : index
    %c0_4 = arith.constant 0 : index
    %4 = vector.load %arg3[%c0_3, %c0_4] : memref<1x128xf32, #tpu.memory_space<vmem>>, vector<1x128xf32>
    %5 = vector.broadcast %4 : vector<1x128xf32> to vector<32x128xf32>
    %6 = arith.addf %3, %5 : vector<32x128xf32>
    %cst_5 = arith.constant 0.000000e+00 : f32
    %7 = vector.broadcast %cst_5 : f32 to vector<32x128xf32>
    %8 = arith.maximumf %6, %7 : vector<32x128xf32>
    %9 = vector.extract_strided_slice %2 {offsets = [0, 128], sizes = [32, 128], strides = [1, 1]} : vector<32x256xf32> to vector<32x128xf32>
    %10 = arith.truncf %8 : vector<32x128xf32> to vector<32x128xbf16>
    %c0_6 = arith.constant 0 : index
    %c0_7 = arith.constant 0 : index
    %11 = vector.load %arg4[%c0_6, %c0_7] : memref<128x128xbf16, #tpu.memory_space<vmem>>, vector<128x128xbf16>
    %cst_8 = arith.constant dense<0.000000e+00> : vector<32x128xf32>
    %12 = tpu.matmul %10, %11, %cst_8 {dimension_numbers = #tpu.dot_dimension_numbers<[1], [0], [0], [1], [0, 0, 1, 1], [], []>} : vector<32x128xbf16>, vector<128x128xbf16>, vector<32x128xf32> -> vector<32x128xf32>
    %13 = arith.addf %12, %9 : vector<32x128xf32>
    %c0_9 = arith.constant 0 : index
    %c0_10 = arith.constant 0 : index
    %14 = vector.load %arg5[%c0_9, %c0_10] : memref<1x128xf32, #tpu.memory_space<vmem>>, vector<1x128xf32>
    %15 = vector.broadcast %14 : vector<1x128xf32> to vector<32x128xf32>
    %16 = arith.addf %13, %15 : vector<32x128xf32>
    %c0_11 = arith.constant 0 : index
    %c0_12 = arith.constant 0 : index
    %17 = vector.load %arg6[%c0_11, %c0_12] : memref<32x128xf32, #tpu.memory_space<vmem>>, vector<32x128xf32>
    tpu.vector_store %arg6[%c0_11, %c0_12], %16 {strides = array<i32>} : memref<32x128xf32, #tpu.memory_space<vmem>>, vector<32x128xf32>,
    return
  }
  func.func @transform_0(%arg0: i32) -> (i32, i32) {
    %c0_i32 = arith.constant 0 : i32
    %c0_i32_0 = arith.constant 0 : i32
    return %arg0, %c0_i32 : i32, i32
  }
  func.func @transform_1(%arg0: i32) -> (i32, i32) {
    %c0_i32 = arith.constant 0 : i32
    %c0_i32_0 = arith.constant 0 : i32
    %c0_i32_1 = arith.constant 0 : i32
    return %c0_i32, %c0_i32_0 : i32, i32
  }
  func.func @transform_2(%arg0: i32) -> (i32, i32) {
    %c0_i32 = arith.constant 0 : i32
    %c0_i32_0 = arith.constant 0 : i32
    %c0_i32_1 = arith.constant 0 : i32
    return %c0_i32, %c0_i32_0 : i32, i32
  }
  func.func @transform_3(%arg0: i32) -> (i32, i32) {
    %c0_i32 = arith.constant 0 : i32
    %c0_i32_0 = arith.constant 0 : i32
    %c0_i32_1 = arith.constant 0 : i32
    return %c0_i32, %c0_i32_0 : i32, i32
  }
  func.func @transform_4(%arg0: i32) -> (i32, i32) {
    %c0_i32 = arith.constant 0 : i32
    %c0_i32_0 = arith.constant 0 : i32
    %c0_i32_1 = arith.constant 0 : i32
    return %c0_i32, %c0_i32_0 : i32, i32
  }
  func.func @transform_5(%arg0: i32) -> (i32, i32) {
    %c0_i32 = arith.constant 0 : i32
    %c0_i32_0 = arith.constant 0 : i32
    return %arg0, %c0_i32 : i32, i32
  }
}

module attributes {stable_mosaic.version = 11 : i64} {
  func.func @_res_block_proj_kernel(%arg0: i32, %arg1: memref<32x32xbf16, #tpu.memory_space<vmem>>, %arg2: memref<32x256xbf16, #tpu.memory_space<vmem>>, %arg3: memref<1x128xf32, #tpu.memory_space<vmem>>, %arg4: memref<128x128xbf16, #tpu.memory_space<vmem>>, %arg5: memref<1x128xf32, #tpu.memory_space<vmem>>, %arg6: memref<32x128xf32, #tpu.memory_space<vmem>>) attributes {dimension_semantics = [#tpu.dimension_semantics<parallel>], iteration_bounds = array<i64: 2>, scalar_prefetch = 0 : i64, scratch_operands = 0 : i64, tpu.core_type = #tpu.core_type<tc>, window_params = [{transform_indices = @transform_0, window_bounds = array<i64: 32, 32>}, {pipeline_mode = #tpu.pipeline_mode<synchronous>, transform_indices = @transform_1, window_bounds = array<i64: 32, 256>}, {pipeline_mode = #tpu.pipeline_mode<synchronous>, transform_indices = @transform_2, window_bounds = array<i64: 1, 128>}, {pipeline_mode = #tpu.pipeline_mode<synchronous>, transform_indices = @transform_3, window_bounds = array<i64: 128, 128>}, {pipeline_mode = #tpu.pipeline_mode<synchronous>, transform_indices = @transform_4, window_bounds = array<i64: 1, 128>}, {transform_indices = @transform_5, window_bounds = array<i64: 32, 128>}]} {
    %c0 = arith.constant 0 : index
    %c0_0 = arith.constant 0 : index
    %0 = vector.load %arg1[%c0, %c0_0] : memref<32x32xbf16, #tpu.memory_space<vmem>>, vector<32x32xbf16>
    %c0_1 = arith.constant 0 : index
    %c0_2 = arith.constant 0 : index
    %1 = vector.load %arg2[%c0_1, %c0_2] : memref<32x256xbf16, #tpu.memory_space<vmem>>, vector<32x256xbf16>
    %cst = arith.constant dense<0.000000e+00> : vector<32x256xf32>
    %2 = tpu.matmul %0, %1, %cst {dimension_numbers = #tpu.dot_dimension_numbers<[1], [0], [0], [1], [0, 0, 1, 1], [], []>} : vector<32x32xbf16>, vector<32x256xbf16>, vector<32x256xf32> -> vector<32x256xf32>
    %3 = vector.extract_strided_slice %2 {offsets = [0, 0], sizes = [32, 128], strides = [1, 1]} : vector<32x256xf32> to vector<32x128xf32>
    %c0_3 = arith.constant 0 : index
    %c0_4 = arith.constant 0 : index
    %4 = vector.load %arg3[%c0_3, %c0_4] : memref<1x128xf32, #tpu.memory_space<vmem>>, vector<1x128xf32>
    %5 = vector.broadcast %4 : vector<1x128xf32> to vector<32x128xf32>
    %6 = arith.addf %3, %5 : vector<32x128xf32>
    %cst_5 = arith.constant 0.000000e+00 : f32
    %7 = vector.broadcast %cst_5 : f32 to vector<32x128xf32>
    %8 = arith.maximumf %6, %7 : vector<32x128xf32>
    %9 = vector.extract_strided_slice %2 {offsets = [0, 128], sizes = [32, 128], strides = [1, 1]} : vector<32x256xf32> to vector<32x128xf32>
    %10 = arith.truncf %8 : vector<32x128xf32> to vector<32x128xbf16>
    %c0_6 = arith.constant 0 : index
    %c0_7 = arith.constant 0 : index
    %11 = vector.load %arg4[%c0_6, %c0_7] : memref<128x128xbf16, #tpu.memory_space<vmem>>, vector<128x128xbf16>
    %cst_8 = arith.constant dense<0.000000e+00> : vector<32x128xf32>
    %12 = tpu.matmul %10, %11, %cst_8 {dimension_numbers = #tpu.dot_dimension_numbers<[1], [0], [0], [1], [0, 0, 1, 1], [], []>} : vector<32x128xbf16>, vector<128x128xbf16>, vector<32x128xf32> -> vector<32x128xf32>
    %13 = arith.addf %12, %9 : vector<32x128xf32>
    %c0_9 = arith.constant 0 : index
    %c0_10 = arith.constant 0 : index
    %14 = vector.load %arg5[%c0_9, %c0_10] : memref<1x128xf32, #tpu.memory_space<vmem>>, vector<1x128xf32>
    %15 = vector.broadcast %14 : vector<1x128xf32> to vector<32x128xf32>
    %16 = arith.addf %13, %15 : vector<32x128xf32>
    %c0_11 = arith.constant 0 : index
    %c0_12 = arith.constant 0 : index
    %17 = vector.load %arg6[%c0_11, %c0_12] : memref<32x128xf32, #tpu.memory_space<vmem>>, vector<32x128xf32>
    tpu.vector_store %arg6[%c0_11, %c0_12], %16 {strides = array<i32>} : memref<32x128xf32, #tpu.memory_space<vmem>>, vector<32x128xf32>,
    return
  }
  func.func @transform_0(%arg0: i32) -> (i32, i32) {
    %c0_i32 = arith.constant 0 : i32
    %c0_i32_0 = arith.constant 0 : i32
    return %arg0, %c0_i32 : i32, i32
  }
  func.func @transform_1(%arg0: i32) -> (i32, i32) {
    %c0_i32 = arith.constant 0 : i32
    %c0_i32_0 = arith.constant 0 : i32
    %c0_i32_1 = arith.constant 0 : i32
    return %c0_i32, %c0_i32_0 : i32, i32
  }
  func.func @transform_2(%arg0: i32) -> (i32, i32) {
    %c0_i32 = arith.constant 0 : i32
    %c0_i32_0 = arith.constant 0 : i32
    %c0_i32_1 = arith.constant 0 : i32
    return %c0_i32, %c0_i32_0 : i32, i32
  }
  func.func @transform_3(%arg0: i32) -> (i32, i32) {
    %c0_i32 = arith.constant 0 : i32
    %c0_i32_0 = arith.constant 0 : i32
    %c0_i32_1 = arith.constant 0 : i32
    return %c0_i32, %c0_i32_0 : i32, i32
  }
  func.func @transform_4(%arg0: i32) -> (i32, i32) {
    %c0_i32 = arith.constant 0 : i32
    %c0_i32_0 = arith.constant 0 : i32
    %c0_i32_1 = arith.constant 0 : i32
    return %c0_i32, %c0_i32_0 : i32, i32
  }
  func.func @transform_5(%arg0: i32) -> (i32, i32) {
    %c0_i32 = arith.constant 0 : i32
    %c0_i32_0 = arith.constant 0 : i32
    return %arg0, %c0_i32 : i32, i32
  }
}

</mosaic_0001>

<llo_original>
// kernel: tpu_custom_call.1
$region0: #{tpu_custom_call.1}
  #allocation0 [shape = 'u32[]', space=smem, size = 0x4, offset = 0x4, fixed_abs, tag = 'smem constant byte address 0x4 - core index']
  #allocation1 [shape = 'u32[72,128]{1,0:T(1,128)}', space=vmem, size = 0x9000, scoped, tag = 'internal scratch']
  %s0 = inlined_call_operand.vmem [shape: bf16[64,32], index: 0, kind: input, shape index: {}]
  %s1 = inlined_call_operand.vmem [shape: bf16[32,256], index: 1, kind: input, shape index: {}]
  %s2 = inlined_call_operand.vmem [shape: f32[1,128], index: 2, kind: input, shape index: {}]
  %s3 = inlined_call_operand.hbm [shape: bf16[128,128], index: 3, kind: input, shape index: {}]
  %s4 = inlined_call_operand.vmem [shape: f32[1,128], index: 4, kind: input, shape index: {}]
  %s5 = inlined_call_operand.hbm [shape: f32[64,128], index: 5, kind: output, shape index: {}]
  %s6 = sld [smem:[#allocation0]]
  $region57: #{tpu_custom_call.1} parent=0
    _
  %s8 = ssub.s32 1, %s6
  %s9 = scalar_select 0, %s8, %s6
  $region1: #{tpu_custom_call.1} parent=0
    #allocation2 [shape = 'u8[32768]{0}', space=vmem, size = 0x8000, scoped, tag = 'input window, operand 3, single buffered']
    #allocation3 [shape = 's32[2]{0}', space=sflag, size = 0x8, scoped, tag = 'scoped memory for tpu_custom_call.1']
    #allocation4 [shape = 's32[2]{0}', space=sflag, size = 0x8, scoped, tag = 'scoped memory for tpu_custom_call.1']
    #allocation5 [shape = 'u8[32768]{0}', space=vmem, size = 0x8000, scoped, tag = 'output window, operand 0']
    %10 = vsyncpa [#allocation3], 0
    %11 = vsyncpa [#allocation4], 0
    %s12 = scalar_lea.sflag [#allocation4], 1
    %13 = vsyncpa %s12, 0
    loop: start=0, step=1, limit=4
    $region2: #{tpu_custom_call.1} parent=1 // loop_pre_header
      _
    $region3: #{tpu_custom_call.1} parent=1 // loop_header
      %s15 = sphi 0, %s19
      %p16 = scmp.ge.s32.totalorder %s15, 4
      %s25 = sphi 0, %s27
      %s28 = sphi 0, %s25
      %s29 = sphi 0, %s28
      %s45 = sphi 0, %s29
      %s49 = sphi 0, %s49
      %s51 = sphi 0, %s49
      %s52 = sphi 0, %s51
      %s66 = sphi 0, %s52
      %s70 = sphi 0, %s70
      %s72 = sphi 0, %s70
      %s73 = sphi 0, %s72
      %s87 = sphi 0, %s73
      %s91 = sphi 0, %s91
      %s93 = sphi 0, %s91
      %s94 = sphi 0, %s93
      %s108 = sphi 0, %s94
      %s112 = sphi 0, %s112
      %s114 = sphi 0, %s112
      %s115 = sphi 0, %s114
      %s129 = sphi 0, %s115
      %s135 = sphi 0, %s137
      %s138 = sphi 0, %s135
      %s139 = sphi 0, %s138
      %s155 = sphi 0, %s139
    $region4: #{tpu_custom_call.1} parent=1 // loop_header_branch
      %18 = sbr.rel (%p16) target = $region8
    $region5: #{tpu_custom_call.1} parent=1 // loop_body
      %s20 = ssub.s32 %s15, 1
      %s21 = ssub.s32 %s15, 2
      %s22 = sadd.s32 %s15, 1
      %s23 = ssub.s32 %s15, %s22
      %p24 = scmp.eq.s32.totalorder %s23, 0
      %s26 = sadd.s32 %s25, 1
      %s27 = scalar_select %p24, %s25, %s26
      %p30 = pneg %p24
      %p31 = scmp.eq.s32.totalorder %s15, 1
      %p32 = por %p30, %p31
      %p33 = scmp.ne.s32.totalorder %s25, %s28
      %p34 = scmp.eq.s32.totalorder %s15, 0
      %p35 = por %p33, %p34
      %p36 = scmp.ne.s32.totalorder %s25, %s28
      %p37 = scmp.eq.s32.totalorder %s20, 1
      %p38 = por %p36, %p37
      %p39 = scmp.ne.s32.totalorder %s28, %s29
      %p40 = scmp.eq.s32.totalorder %s20, 0
      %p41 = por %p39, %p40
      %p42 = scmp.ne.s32.totalorder %s28, %s29
      %p43 = scmp.eq.s32.totalorder %s21, 1
      %p44 = por %p42, %p43
      %p46 = scmp.ne.s32.totalorder %s29, %s45
      %p47 = scmp.eq.s32.totalorder %s21, 0
      %p48 = por %p46, %p47
      %s50 = sadd.s32 %s49, 1
      %p53 = scmp.eq.s32.totalorder %s15, 1
      %p54 = scmp.ne.s32.totalorder %s49, %s51
      %p55 = scmp.eq.s32.totalorder %s15, 0
      %p56 = por %p54, %p55
      %p57 = scmp.ne.s32.totalorder %s49, %s51
      %p58 = scmp.eq.s32.totalorder %s20, 1
      %p59 = por %p57, %p58
      %p60 = scmp.ne.s32.totalorder %s51, %s52
      %p61 = scmp.eq.s32.totalorder %s20, 0
      %p62 = por %p60, %p61
      %p63 = scmp.ne.s32.totalorder %s51, %s52
      %p64 = scmp.eq.s32.totalorder %s21, 1
      %p65 = por %p63, %p64
      %p67 = scmp.ne.s32.totalorder %s52, %s66
      %p68 = scmp.eq.s32.totalorder %s21, 0
      %p69 = por %p67, %p68
      %s71 = sadd.s32 %s70, 1
      %p74 = scmp.eq.s32.totalorder %s15, 1
      %p75 = scmp.ne.s32.totalorder %s70, %s72
      %p76 = scmp.eq.s32.totalorder %s15, 0
      %p77 = por %p75, %p76
      %p78 = scmp.ne.s32.totalorder %s70, %s72
      %p79 = scmp.eq.s32.totalorder %s20, 1
      %p80 = por %p78, %p79
      %p81 = scmp.ne.s32.totalorder %s72, %s73
      %p82 = scmp.eq.s32.totalorder %s20, 0
      %p83 = por %p81, %p82
      %p84 = scmp.ne.s32.totalorder %s72, %s73
      %p85 = scmp.eq.s32.totalorder %s21, 1
      %p86 = por %p84, %p85
      %p88 = scmp.ne.s32.totalorder %s73, %s87
      %p89 = scmp.eq.s32.totalorder %s21, 0
      %p90 = por %p88, %p89
      %s92 = sadd.s32 %s91, 1
      %p95 = scmp.eq.s32.totalorder %s15, 1
      %p96 = scmp.ne.s32.totalorder %s91, %s93
      %p97 = scmp.eq.s32.totalorder %s15, 0
      %p98 = por %p96, %p97
      %p99 = scmp.ne.s32.totalorder %s91, %s93
      %p100 = scmp.eq.s32.totalorder %s20, 1
      %p101 = por %p99, %p100
      %p102 = scmp.ne.s32.totalorder %s93, %s94
      %p103 = scmp.eq.s32.totalorder %s20, 0
      %p104 = por %p102, %p103
      %p105 = scmp.ne.s32.totalorder %s93, %s94
      %p106 = scmp.eq.s32.totalorder %s21, 1
      %p107 = por %p105, %p106
      %p109 = scmp.ne.s32.totalorder %s94, %s108
      %p110 = scmp.eq.s32.totalorder %s21, 0
      %p111 = por %p109, %p110
      %s113 = sadd.s32 %s112, 1
      %p116 = scmp.eq.s32.totalorder %s15, 1
      %p117 = scmp.ne.s32.totalorder %s112, %s114
      %p118 = scmp.eq.s32.totalorder %s15, 0
      %p119 = por %p117, %p118
      %p120 = scmp.ne.s32.totalorder %s112, %s114
      %p121 = scmp.eq.s32.totalorder %s20, 1
      %p122 = por %p120, %p121
      %p123 = scmp.ne.s32.totalorder %s114, %s115
      %p124 = scmp.eq.s32.totalorder %s20, 0
      %p125 = por %p123, %p124
      %p126 = scmp.ne.s32.totalorder %s114, %s115
      %p127 = scmp.eq.s32.totalorder %s21, 1
      %p128 = por %p126, %p127
      %p130 = scmp.ne.s32.totalorder %s115, %s129
      %p131 = scmp.eq.s32.totalorder %s21, 0
      %p132 = por %p130, %p131
      %s133 = ssub.s32 %s15, %s22
      %p134 = scmp.eq.s32.totalorder %s133, 0
      %s136 = sadd.s32 %s135, 1
      %s137 = scalar_select %p134, %s135, %s136
      %p140 = pneg %p134
      %p141 = scmp.eq.s32.totalorder %s15, 1
      %p142 = por %p140, %p141
      %p143 = scmp.ne.s32.totalorder %s135, %s138
      %p144 = scmp.eq.s32.totalorder %s15, 0
      %p145 = por %p143, %p144
      %p146 = scmp.ne.s32.totalorder %s135, %s138
      %p147 = scmp.eq.s32.totalorder %s20, 1
      %p148 = por %p146, %p147
      %p149 = scmp.ne.s32.totalorder %s138, %s139
      %p150 = scmp.eq.s32.totalorder %s20, 0
      %p151 = por %p149, %p150
      %p152 = scmp.ne.s32.totalorder %s138, %s139
      %p153 = scmp.eq.s32.totalorder %s21, 1
      %p154 = por %p152, %p153
      %p156 = scmp.ne.s32.totalorder %s139, %s155
      %p157 = scmp.eq.s32.totalorder %s21, 0
      %p158 = por %p156, %p157
      %p159 = scmp.le.s32.totalorder 1, %s15
      %p160 = scmp.lt.s32.totalorder %s15, 3
      %p161 = pnand %p159, %p160
      %p162 = pneg %p161
      // Predicated region
      $region9: #{tpu_custom_call.1} parent=5 // pred_check
        _
      $region10: #{tpu_custom_call.1} parent=5 // pred_check_branch
        %164 = sbr.rel (%p161) target = $region12
      $region11: #{tpu_custom_call.1} parent=5 // pred_region
        %s165 = ssub.s32 %s15, 1
        // Predicated region
        $region13: #{tpu_custom_call.1} parent=11 // pred_check
          %p166 = pneg %p62
        $region14: #{tpu_custom_call.1} parent=11 // pred_check_branch
          %168 = sbr.rel (%p166) target = $region16
        $region15: #{tpu_custom_call.1} parent=11 // pred_region
          _
        $region16: #{tpu_custom_call.1} parent=11 // pred_fallthru
          _
        // Predicated region
        $region17: #{tpu_custom_call.1} parent=11 // pred_check
          %p169 = pneg %p83
        $region18: #{tpu_custom_call.1} parent=11 // pred_check_branch
          %171 = sbr.rel (%p169) target = $region20
        $region19: #{tpu_custom_call.1} parent=11 // pred_region
          _
        $region20: #{tpu_custom_call.1} parent=11 // pred_fallthru
          _
        // Predicated region
        $region21: #{tpu_custom_call.1} parent=11 // pred_check
          %p172 = pneg %p104
        $region22: #{tpu_custom_call.1} parent=11 // pred_check_branch
          %174 = sbr.rel (%p172) target = $region24
        $region23: #{tpu_custom_call.1} parent=11 // pred_region
          %176 = vsyncadd [#allocation3], 0
          %s177 = sshll.u32 %s3, 4
          %s178 = int_to_ptr.hbm [resolvable:$true] %s177
          %s179 = sshll.u32 [#allocation2], 4
          %s180 = int_to_ptr.vmem [resolvable:$true] %s179
          %185 = dma.hbm_to_vmem [thread:$0]  %s178, 1024, %s180, [#allocation3], 64, 64, 4
        $region24: #{tpu_custom_call.1} parent=11 // pred_fallthru
          _
        // Predicated region
        $region25: #{tpu_custom_call.1} parent=11 // pred_check
          %p186 = pneg %p125
        $region26: #{tpu_custom_call.1} parent=11 // pred_check_branch
          %188 = sbr.rel (%p186) target = $region28
        $region27: #{tpu_custom_call.1} parent=11 // pred_region
          _
        $region28: #{tpu_custom_call.1} parent=11 // pred_fallthru
          _
      $region12: #{tpu_custom_call.1} parent=5 // pred_fallthru
        _
      %p189 = scmp.lt.s32.totalorder %s15, 2
      // Predicated region
      $region29: #{tpu_custom_call.1} parent=5 // pred_check
        %p190 = pneg %p189
      $region30: #{tpu_custom_call.1} parent=5 // pred_check_branch
        %192 = sbr.rel (%p190) target = $region32
      $region31: #{tpu_custom_call.1} parent=5 // pred_region
        // Predicated region
        $region33: #{tpu_custom_call.1} parent=31 // pred_check
          %p193 = pneg %p35
        $region34: #{tpu_custom_call.1} parent=31 // pred_check_branch
          %195 = sbr.rel (%p193) target = $region36
        $region35: #{tpu_custom_call.1} parent=31 // pred_region
          %s196 = smul.u32 4, %s15
          %p197 = scmp.lt.s32.totalorder %s196, 7
          %s198 = scalar_select %p197, %s196, 7
          %s199 = smul.addr %s198, 4
          %s200 = scalar_lea.vmem %s0, %s199
          %s201 = smul.u32 4, %s15
        $region36: #{tpu_custom_call.1} parent=31 // pred_fallthru
          _
      $region32: #{tpu_custom_call.1} parent=5 // pred_fallthru
        _
      %p202 = scmp.le.s32.totalorder 1, %s15
      %p203 = scmp.lt.s32.totalorder %s15, 3
      %p204 = pnand %p202, %p203
      %p205 = pneg %p204
      // Predicated region
      $region37: #{tpu_custom_call.1} parent=5 // pred_check
        _
      $region38: #{tpu_custom_call.1} parent=5 // pred_check_branch
        %207 = sbr.rel (%p204) target = $region40
      $region39: #{tpu_custom_call.1} parent=5 // pred_region
        %s208 = ssub.s32 %s15, 1
        // Predicated region
        $region41: #{tpu_custom_call.1} parent=39 // pred_check
          %p209 = pneg %p104
        $region42: #{tpu_custom_call.1} parent=39 // pred_check_branch
          %211 = sbr.rel (%p209) target = $region44
        $region43: #{tpu_custom_call.1} parent=39 // pred_region
          %213 = dma.done [#allocation3], 1024
        $region44: #{tpu_custom_call.1} parent=39 // pred_fallthru
          _
        %s214 = smul.u32 4, %s20
        %p215 = scmp.lt.s32.totalorder %s214, 7
        %s216 = scalar_select %p215, %s214, 7
        %s217 = smul.addr %s216, 4
        %s218 = scalar_lea.vmem %s0, %s217
        %p219 = pneg %p41
        %p220 = pneg %p38
        %p221 = pneg %p62
        %p222 = pneg %p59
        %p223 = pneg %p83
        %p224 = pneg %p80
        %p225 = pneg %p104
        %p226 = pneg %p101
        %p227 = pneg %p125
        %p228 = pneg %p122
        %p229 = pneg %p151
        %p230 = pneg %p148
        %s231 = sand.u32 %s138, 1
        %s232 = scalar_lea.sflag [#allocation4], %s231
        %s233 = sand.u32 %s138, 1
        %s234 = smul.addr %s233, 32
        %s235 = scalar_lea.vmem [#allocation5], %s234
        %s236 = smul.u32 4, %s20
        %p237 = scmp.lt.s32.totalorder %s236, 7
        %s238 = scalar_select %p237, %s236, 7
        %s239 = smul.addr %s238, 4
        %s240 = scalar_lea.vmem %s0, %s239
        %s241 = smul.u32 4, %s20
        %s242 = smul.u32 4, %s20
        %v244 = vld [vmem:[%s240] sm:$0xf]
        %v245 = vld [vmem:[%s240 + $0x4] sm:$0xf]
        %v246 = vld [vmem:[%s240 + $0x8] sm:$0xf]
        %v247 = vld [vmem:[%s240 + $0xc] sm:$0xf]
        %v248 = vld [vmem:[%s1] sm:$0xff]
        %v249 = vld [vmem:[%s1 + $0x8] sm:$0xff]
        %v250 = vld [vmem:[%s1 + $0x10] sm:$0xff]
        %v251 = vld [vmem:[%s1 + $0x18] sm:$0xff]
        %v256 = vunpack.c.l.b16 %v244
        %v257 = vunpack.c.l.b16 %v245
        %v258 = vunpack.c.l.b16 %v246
        %v259 = vunpack.c.l.b16 %v247
        %v260 = vpack.c.b16 %v257, %v256
        %v261 = vpack.c.b16 %v259, %v258
        %v266 = vunpack.c.l.b16 %v248
        %v267 = vunpack.c.h.b16 %v248
        %v268 = vunpack.c.l.b16 %v249
        %v269 = vunpack.c.h.b16 %v249
        %v270 = vunpack.c.l.b16 %v250
        %v271 = vunpack.c.h.b16 %v250
        %v272 = vunpack.c.l.b16 %v251
        %v273 = vunpack.c.h.b16 %v251
        %v274 = vpack.c.b16 %v268, %v266
        %v275 = vpack.c.b16 %v269, %v267
        %v276 = vpack.c.b16 %v272, %v270
        %v277 = vpack.c.b16 %v273, %v271
        %vm282 = vcmask 261120
        %v284 = vsel %vm282, %v260, 0
        %v287 = vsel %vm282, %v261, 0
        %289 = vmatpush.bf16.msra.mxu0 0
        %290 = vmatpush.bf16.msra.mxu0 0
        %291 = vmatpush.bf16.msra.mxu0 0
        %292 = vmatpush.bf16.msra.mxu0 0
        %293 = vmatpush.bf16.msra.mxu0 0
        %294 = vmatpush.bf16.msra.mxu0 0
        %295 = vmatpush.bf16.msra.mxu0 %v276
        %296 = vmatpush.bf16.msra.mxu0 %v274
        %297 = vmatmul.bf16.gmra.mxu0 %v284
        %v298 = vpop.f32.mrf.mxu0
        %v299 = vadd.f32 0.0, %v298
        %v300 = vpop.f32.mrf.mxu0
        %v301 = vadd.f32 0.0, %v300
        %302 = vmatmul.bf16.gmra.mxu0 %v287
        %v303 = vpop.f32.mrf.mxu0
        %v304 = vadd.f32 0.0, %v303
        %v305 = vpop.f32.mrf.mxu0
        %v306 = vadd.f32 0.0, %v305
        %307 = vdwg.mxu0
        %308 = vmatpush.bf16.msra.mxu0 0
        %309 = vmatpush.bf16.msra.mxu0 0
        %310 = vmatpush.bf16.msra.mxu0 0
        %311 = vmatpush.bf16.msra.mxu0 0
        %312 = vmatpush.bf16.msra.mxu0 0
        %313 = vmatpush.bf16.msra.mxu0 0
        %314 = vmatpush.bf16.msra.mxu0 %v277
        %315 = vmatpush.bf16.msra.mxu0 %v275
        %316 = vmatmul.bf16.gmra.mxu0 %v284
        %v317 = vpop.f32.mrf.mxu0
        %v318 = vadd.f32 0.0, %v317
        %v319 = vpop.f32.mrf.mxu0
        %v320 = vadd.f32 0.0, %v319
        %321 = vmatmul.bf16.gmra.mxu0 %v287
        %v322 = vpop.f32.mrf.mxu0
        %v323 = vadd.f32 0.0, %v322
        %v324 = vpop.f32.mrf.mxu0
        %v325 = vadd.f32 0.0, %v324
        %326 = vdwg.mxu0
        %v327 = vld [vmem:[%s2] sm:$0x1]
        %v329 = vperm.slane %v327, 0
        %v331 = vadd.f32 %v299, %v329
        %v332 = vadd.f32 %v301, %v329
        %v333 = vadd.f32 %v304, %v329
        %v334 = vadd.f32 %v306, %v329
        %v335 = vmax.f32 %v331, 0.0
        %v336 = vmax.f32 %v332, 0.0
        %v337 = vmax.f32 %v333, 0.0
        %v338 = vmax.f32 %v334, 0.0
        %v339 = vpack.c.bf16 %v336, %v335
        %v340 = vpack.c.bf16 %v338, %v337
        %v341 = vld [vmem:[#allocation2] sm:$0xf]
        %v342 = vld [vmem:[#allocation2 + $0x4] sm:$0xf]
        %v343 = vld [vmem:[#allocation2 + $0x8] sm:$0xf]
        %v344 = vld [vmem:[#allocation2 + $0xc] sm:$0xf]
        %v345 = vld [vmem:[#allocation2 + $0x10] sm:$0xf]
        %v346 = vld [vmem:[#allocation2 + $0x14] sm:$0xf]
        %v347 = vld [vmem:[#allocation2 + $0x18] sm:$0xf]
        %v348 = vld [vmem:[#allocation2 + $0x1c] sm:$0xf]
        %v349 = vld [vmem:[#allocation2 + $0x20] sm:$0xf]
        %v350 = vld [vmem:[#allocation2 + $0x24] sm:$0xf]
        %v351 = vld [vmem:[#allocation2 + $0x28] sm:$0xf]
        %v352 = vld [vmem:[#allocation2 + $0x2c] sm:$0xf]
        %v353 = vld [vmem:[#allocation2 + $0x30] sm:$0xf]
        %v354 = vld [vmem:[#allocation2 + $0x34] sm:$0xf]
        %v355 = vld [vmem:[#allocation2 + $0x38] sm:$0xf]
        %v356 = vld [vmem:[#allocation2 + $0x3c] sm:$0xf]
        %v373 = vunpack.c.l.b16 %v341
        %v374 = vunpack.c.l.b16 %v342
        %v375 = vunpack.c.l.b16 %v343
        %v376 = vunpack.c.l.b16 %v344
        %v377 = vunpack.c.l.b16 %v345
        %v378 = vunpack.c.l.b16 %v346
        %v379 = vunpack.c.l.b16 %v347
        %v380 = vunpack.c.l.b16 %v348
        %v381 = vunpack.c.l.b16 %v349
        %v382 = vunpack.c.l.b16 %v350
        %v383 = vunpack.c.l.b16 %v351
        %v384 = vunpack.c.l.b16 %v352
        %v385 = vunpack.c.l.b16 %v353
        %v386 = vunpack.c.l.b16 %v354
        %v387 = vunpack.c.l.b16 %v355
        %v388 = vunpack.c.l.b16 %v356
        %v389 = vpack.c.b16 %v374, %v373
        %v390 = vpack.c.b16 %v376, %v375
        %v391 = vpack.c.b16 %v378, %v377
        %v392 = vpack.c.b16 %v380, %v379
        %v393 = vpack.c.b16 %v382, %v381
        %v394 = vpack.c.b16 %v384, %v383
        %v395 = vpack.c.b16 %v386, %v385
        %v396 = vpack.c.b16 %v388, %v387
        %405 = vmatpush.bf16.msra.mxu0 %v396
        %406 = vmatpush.bf16.msra.mxu0 %v395
        %407 = vmatpush.bf16.msra.mxu0 %v394
        %408 = vmatpush.bf16.msra.mxu0 %v393
        %409 = vmatpush.bf16.msra.mxu0 %v392
        %410 = vmatpush.bf16.msra.mxu0 %v391
        %411 = vmatpush.bf16.msra.mxu0 %v390
        %412 = vmatpush.bf16.msra.mxu0 %v389
        %413 = vmatmul.bf16.gmra.mxu0 %v339
        %v414 = vpop.f32.mrf.mxu0
        %v415 = vadd.f32 %v318, %v414
        %v416 = vpop.f32.mrf.mxu0
        %v417 = vadd.f32 %v320, %v416
        %418 = vmatmul.bf16.gmra.mxu0 %v340
        %v419 = vpop.f32.mrf.mxu0
        %v420 = vadd.f32 %v323, %v419
        %v421 = vpop.f32.mrf.mxu0
        %v422 = vadd.f32 %v325, %v421
        %423 = vdwg.mxu0
        %v424 = vld [vmem:[%s4] sm:$0x1]
        %v426 = vperm.slane %v424, 0
        %v428 = vadd.f32 %v415, %v426
        %v429 = vadd.f32 %v417, %v426
        %v430 = vadd.f32 %v420, %v426
        %v431 = vadd.f32 %v422, %v426
        %432 = vst [vmem:[%s235] sm:$0xff] %v428
        %433 = vst [vmem:[%s235 + $0x8] sm:$0xff] %v429
        %434 = vst [vmem:[%s235 + $0x10] sm:$0xff] %v430
        %435 = vst [vmem:[%s235 + $0x18] sm:$0xff] %v431
        %s436 = sand.u32 %s138, 1
        %s437 = scalar_lea.sflag [#allocation4], %s436
        %s438 = sand.u32 %s138, 1
        %s439 = smul.addr %s438, 32
        %s440 = scalar_lea.vmem [#allocation5], %s439
        // Predicated region
        $region45: #{tpu_custom_call.1} parent=39 // pred_check
          %p441 = pneg %p148
        $region46: #{tpu_custom_call.1} parent=39 // pred_check_branch
          %443 = sbr.rel (%p441) target = $region48
        $region47: #{tpu_custom_call.1} parent=39 // pred_region
          %s444 = smul.u32 4, %s20
          %446 = vsyncadd %s437, 0
          %s447 = smul.addr %s444, 8
          %s448 = scalar_lea.hbm %s5, %s447
          %s449 = sshll.u32 %s440, 4
          %s450 = int_to_ptr.vmem [resolvable:$true] %s449
          %s451 = sshll.u32 %s448, 4
          %s452 = int_to_ptr.hbm [resolvable:$true] %s451
          %457 = dma.vmem_to_hbm [thread:$0]  %s450, 512, %s452, %s437, 128, 128, 8
        $region48: #{tpu_custom_call.1} parent=39 // pred_fallthru
          _
      $region40: #{tpu_custom_call.1} parent=5 // pred_fallthru
        _
      %p458 = scmp.le.s32.totalorder 2, %s15
      // Predicated region
      $region49: #{tpu_custom_call.1} parent=5 // pred_check
        %p459 = pneg %p458
      $region50: #{tpu_custom_call.1} parent=5 // pred_check_branch
        %461 = sbr.rel (%p459) target = $region52
      $region51: #{tpu_custom_call.1} parent=5 // pred_region
        %s462 = ssub.s32 %s15, 2
        // Predicated region
        $region53: #{tpu_custom_call.1} parent=51 // pred_check
          %p463 = pneg %p154
        $region54: #{tpu_custom_call.1} parent=51 // pred_check_branch
          %465 = sbr.rel (%p463) target = $region56
        $region55: #{tpu_custom_call.1} parent=51 // pred_region
          %s466 = sand.u32 %s139, 1
          %s467 = scalar_lea.sflag [#allocation4], %s466
          %s468 = sand.u32 %s139, 1
          %s469 = smul.addr %s468, 32
          %s470 = scalar_lea.vmem [#allocation5], %s469
          %472 = dma.done %s467, 512
        $region56: #{tpu_custom_call.1} parent=51 // pred_fallthru
          _
      $region52: #{tpu_custom_call.1} parent=5 // pred_fallthru
        _
    $region6: #{tpu_custom_call.1} parent=1 // loop_footer
      %s19 = sadd.s32 1, %s15
    $region7: #{tpu_custom_call.1} parent=1 // loop_footer_branch
      %14 = sbr.rel target = $region3
    $region8: #{tpu_custom_call.1} parent=1 // loop_exit
      _
    %473 = vsyncpa [#allocation3], 1
    %s474 = scalar_lea.sflag [#allocation3], 1
    %475 = vsyncpa %s474, 1
    %476 = vsyncpa [#allocation4], 1
    %s477 = scalar_lea.sflag [#allocation4], 1
    %478 = vsyncpa %s477, 1

// kernel: tpu_custom_call.1
$region0: #{tpu_custom_call.1}
  #allocation0 [shape = 'u32[]', space=smem, size = 0x4, offset = 0x4, fixed_abs, tag = 'smem constant byte address 0x4 - core index']
  #allocation1 [shape = 'u32[72,128]{1,0:T(1,128)}', space=vmem, size = 0x9000, scoped, tag = 'internal scratch']
  %s0 = inlined_call_operand.vmem [shape: bf16[64,32], index: 0, kind: input, shape index: {}]
  %s1 = inlined_call_operand.vmem [shape: bf16[32,256], index: 1, kind: input, shape index: {}]
  %s2 = inlined_call_operand.vmem [shape: f32[1,128], index: 2, kind: input, shape index: {}]
  %s3 = inlined_call_operand.hbm [shape: bf16[128,128], index: 3, kind: input, shape index: {}]
  %s4 = inlined_call_operand.vmem [shape: f32[1,128], index: 4, kind: input, shape index: {}]
  %s5 = inlined_call_operand.hbm [shape: f32[64,128], index: 5, kind: output, shape index: {}]
  %s6 = sld [smem:[#allocation0]]
  $region57: #{tpu_custom_call.1} parent=0
    _
  %s8 = ssub.s32 1, %s6
  %s9 = scalar_select 0, %s8, %s6
  $region1: #{tpu_custom_call.1} parent=0
    #allocation2 [shape = 'u8[32768]{0}', space=vmem, size = 0x8000, scoped, tag = 'input window, operand 3, single buffered']
    #allocation3 [shape = 's32[2]{0}', space=sflag, size = 0x8, scoped, tag = 'scoped memory for tpu_custom_call.1']
    #allocation4 [shape = 's32[2]{0}', space=sflag, size = 0x8, scoped, tag = 'scoped memory for tpu_custom_call.1']
    #allocation5 [shape = 'u8[32768]{0}', space=vmem, size = 0x8000, scoped, tag = 'output window, operand 0']
    %10 = vsyncpa [#allocation3], 0
    %11 = vsyncpa [#allocation4], 0
    %s12 = scalar_lea.sflag [#allocation4], 1
    %13 = vsyncpa %s12, 0
    loop: start=0, step=1, limit=4
    $region2: #{tpu_custom_call.1} parent=1 // loop_pre_header
      _
    $region3: #{tpu_custom_call.1} parent=1 // loop_header
      %s15 = sphi 0, %s19
      %p16 = scmp.ge.s32.totalorder %s15, 4
      %s25 = sphi 0, %s27
      %s28 = sphi 0, %s25
      %s29 = sphi 0, %s28
      %s45 = sphi 0, %s29
      %s49 = sphi 0, %s49
      %s51 = sphi 0, %s49
      %s52 = sphi 0, %s51
      %s66 = sphi 0, %s52
      %s70 = sphi 0, %s70
      %s72 = sphi 0, %s70
      %s73 = sphi 0, %s72
      %s87 = sphi 0, %s73
      %s91 = sphi 0, %s91
      %s93 = sphi 0, %s91
      %s94 = sphi 0, %s93
      %s108 = sphi 0, %s94
      %s112 = sphi 0, %s112
      %s114 = sphi 0, %s112
      %s115 = sphi 0, %s114
      %s129 = sphi 0, %s115
      %s135 = sphi 0, %s137
      %s138 = sphi 0, %s135
      %s139 = sphi 0, %s138
      %s155 = sphi 0, %s139
    $region4: #{tpu_custom_call.1} parent=1 // loop_header_branch
      %18 = sbr.rel (%p16) target = $region8
    $region5: #{tpu_custom_call.1} parent=1 // loop_body
      %s20 = ssub.s32 %s15, 1
      %s21 = ssub.s32 %s15, 2
      %s22 = sadd.s32 %s15, 1
      %s23 = ssub.s32 %s15, %s22
      %p24 = scmp.eq.s32.totalorder %s23, 0
      %s26 = sadd.s32 %s25, 1
      %s27 = scalar_select %p24, %s25, %s26
      %p30 = pneg %p24
      %p31 = scmp.eq.s32.totalorder %s15, 1
      %p32 = por %p30, %p31
      %p33 = scmp.ne.s32.totalorder %s25, %s28
      %p34 = scmp.eq.s32.totalorder %s15, 0
      %p35 = por %p33, %p34
      %p36 = scmp.ne.s32.totalorder %s25, %s28
      %p37 = scmp.eq.s32.totalorder %s20, 1
      %p38 = por %p36, %p37
      %p39 = scmp.ne.s32.totalorder %s28, %s29
      %p40 = scmp.eq.s32.totalorder %s20, 0
      %p41 = por %p39, %p40
      %p42 = scmp.ne.s32.totalorder %s28, %s29
      %p43 = scmp.eq.s32.totalorder %s21, 1
      %p44 = por %p42, %p43
      %p46 = scmp.ne.s32.totalorder %s29, %s45
      %p47 = scmp.eq.s32.totalorder %s21, 0
      %p48 = por %p46, %p47
      %s50 = sadd.s32 %s49, 1
      %p53 = scmp.eq.s32.totalorder %s15, 1
      %p54 = scmp.ne.s32.totalorder %s49, %s51
      %p55 = scmp.eq.s32.totalorder %s15, 0
      %p56 = por %p54, %p55
      %p57 = scmp.ne.s32.totalorder %s49, %s51
      %p58 = scmp.eq.s32.totalorder %s20, 1
      %p59 = por %p57, %p58
      %p60 = scmp.ne.s32.totalorder %s51, %s52
      %p61 = scmp.eq.s32.totalorder %s20, 0
      %p62 = por %p60, %p61
      %p63 = scmp.ne.s32.totalorder %s51, %s52
      %p64 = scmp.eq.s32.totalorder %s21, 1
      %p65 = por %p63, %p64
      %p67 = scmp.ne.s32.totalorder %s52, %s66
      %p68 = scmp.eq.s32.totalorder %s21, 0
      %p69 = por %p67, %p68
      %s71 = sadd.s32 %s70, 1
      %p74 = scmp.eq.s32.totalorder %s15, 1
      %p75 = scmp.ne.s32.totalorder %s70, %s72
      %p76 = scmp.eq.s32.totalorder %s15, 0
      %p77 = por %p75, %p76
      %p78 = scmp.ne.s32.totalorder %s70, %s72
      %p79 = scmp.eq.s32.totalorder %s20, 1
      %p80 = por %p78, %p79
      %p81 = scmp.ne.s32.totalorder %s72, %s73
      %p82 = scmp.eq.s32.totalorder %s20, 0
      %p83 = por %p81, %p82
      %p84 = scmp.ne.s32.totalorder %s72, %s73
      %p85 = scmp.eq.s32.totalorder %s21, 1
      %p86 = por %p84, %p85
      %p88 = scmp.ne.s32.totalorder %s73, %s87
      %p89 = scmp.eq.s32.totalorder %s21, 0
      %p90 = por %p88, %p89
      %s92 = sadd.s32 %s91, 1
      %p95 = scmp.eq.s32.totalorder %s15, 1
      %p96 = scmp.ne.s32.totalorder %s91, %s93
      %p97 = scmp.eq.s32.totalorder %s15, 0
      %p98 = por %p96, %p97
      %p99 = scmp.ne.s32.totalorder %s91, %s93
      %p100 = scmp.eq.s32.totalorder %s20, 1
      %p101 = por %p99, %p100
      %p102 = scmp.ne.s32.totalorder %s93, %s94
      %p103 = scmp.eq.s32.totalorder %s20, 0
      %p104 = por %p102, %p103
      %p105 = scmp.ne.s32.totalorder %s93, %s94
      %p106 = scmp.eq.s32.totalorder %s21, 1
      %p107 = por %p105, %p106
      %p109 = scmp.ne.s32.totalorder %s94, %s108
      %p110 = scmp.eq.s32.totalorder %s21, 0
      %p111 = por %p109, %p110
      %s113 = sadd.s32 %s112, 1
      %p116 = scmp.eq.s32.totalorder %s15, 1
      %p117 = scmp.ne.s32.totalorder %s112, %s114
      %p118 = scmp.eq.s32.totalorder %s15, 0
      %p119 = por %p117, %p118
      %p120 = scmp.ne.s32.totalorder %s112, %s114
      %p121 = scmp.eq.s32.totalorder %s20, 1
      %p122 = por %p120, %p121
      %p123 = scmp.ne.s32.totalorder %s114, %s115
      %p124 = scmp.eq.s32.totalorder %s20, 0
      %p125 = por %p123, %p124
      %p126 = scmp.ne.s32.totalorder %s114, %s115
      %p127 = scmp.eq.s32.totalorder %s21, 1
      %p128 = por %p126, %p127
      %p130 = scmp.ne.s32.totalorder %s115, %s129
      %p131 = scmp.eq.s32.totalorder %s21, 0
      %p132 = por %p130, %p131
      %s133 = ssub.s32 %s15, %s22
      %p134 = scmp.eq.s32.totalorder %s133, 0
      %s136 = sadd.s32 %s135, 1
      %s137 = scalar_select %p134, %s135, %s136
      %p140 = pneg %p134
      %p141 = scmp.eq.s32.totalorder %s15, 1
      %p142 = por %p140, %p141
      %p143 = scmp.ne.s32.totalorder %s135, %s138
      %p144 = scmp.eq.s32.totalorder %s15, 0
      %p145 = por %p143, %p144
      %p146 = scmp.ne.s32.totalorder %s135, %s138
      %p147 = scmp.eq.s32.totalorder %s20, 1
      %p148 = por %p146, %p147
      %p149 = scmp.ne.s32.totalorder %s138, %s139
      %p150 = scmp.eq.s32.totalorder %s20, 0
      %p151 = por %p149, %p150
      %p152 = scmp.ne.s32.totalorder %s138, %s139
      %p153 = scmp.eq.s32.totalorder %s21, 1
      %p154 = por %p152, %p153
      %p156 = scmp.ne.s32.totalorder %s139, %s155
      %p157 = scmp.eq.s32.totalorder %s21, 0
      %p158 = por %p156, %p157
      %p159 = scmp.le.s32.totalorder 1, %s15
      %p160 = scmp.lt.s32.totalorder %s15, 3
      %p161 = pnand %p159, %p160
      %p162 = pneg %p161
      // Predicated region
      $region9: #{tpu_custom_call.1} parent=5 // pred_check
        _
      $region10: #{tpu_custom_call.1} parent=5 // pred_check_branch
        %164 = sbr.rel (%p161) target = $region12
      $region11: #{tpu_custom_call.1} parent=5 // pred_region
        %s165 = ssub.s32 %s15, 1
        // Predicated region
        $region13: #{tpu_custom_call.1} parent=11 // pred_check
          %p166 = pneg %p62
        $region14: #{tpu_custom_call.1} parent=11 // pred_check_branch
          %168 = sbr.rel (%p166) target = $region16
        $region15: #{tpu_custom_call.1} parent=11 // pred_region
          _
        $region16: #{tpu_custom_call.1} parent=11 // pred_fallthru
          _
        // Predicated region
        $region17: #{tpu_custom_call.1} parent=11 // pred_check
          %p169 = pneg %p83
        $region18: #{tpu_custom_call.1} parent=11 // pred_check_branch
          %171 = sbr.rel (%p169) target = $region20
        $region19: #{tpu_custom_call.1} parent=11 // pred_region
          _
        $region20: #{tpu_custom_call.1} parent=11 // pred_fallthru
          _
        // Predicated region
        $region21: #{tpu_custom_call.1} parent=11 // pred_check
          %p172 = pneg %p104
        $region22: #{tpu_custom_call.1} parent=11 // pred_check_branch
          %174 = sbr.rel (%p172) target = $region24
        $region23: #{tpu_custom_call.1} parent=11 // pred_region
          %176 = vsyncadd [#allocation3], 0
          %s177 = sshll.u32 %s3, 4
          %s178 = int_to_ptr.hbm [resolvable:$true] %s177
          %s179 = sshll.u32 [#allocation2], 4
          %s180 = int_to_ptr.vmem [resolvable:$true] %s179
          %185 = dma.hbm_to_vmem [thread:$0]  %s178, 1024, %s180, [#allocation3], 64, 64, 4
        $region24: #{tpu_custom_call.1} parent=11 // pred_fallthru
          _
        // Predicated region
        $region25: #{tpu_custom_call.1} parent=11 // pred_check
          %p186 = pneg %p125
        $region26: #{tpu_custom_call.1} parent=11 // pred_check_branch
          %188 = sbr.rel (%p186) target = $region28
        $region27: #{tpu_custom_call.1} parent=11 // pred_region
          _
        $region28: #{tpu_custom_call.1} parent=11 // pred_fallthru
          _
      $region12: #{tpu_custom_call.1} parent=5 // pred_fallthru
        _
      %p189 = scmp.lt.s32.totalorder %s15, 2
      // Predicated region
      $region29: #{tpu_custom_call.1} parent=5 // pred_check
        %p190 = pneg %p189
      $region30: #{tpu_custom_call.1} parent=5 // pred_check_branch
        %192 = sbr.rel (%p190) target = $region32
      $region31: #{tpu_custom_call.1} parent=5 // pred_region
        // Predicated region
        $region33: #{tpu_custom_call.1} parent=31 // pred_check
          %p193 = pneg %p35
        $region34: #{tpu_custom_call.1} parent=31 // pred_check_branch
          %195 = sbr.rel (%p193) target = $region36
        $region35: #{tpu_custom_call.1} parent=31 // pred_region
          %s196 = smul.u32 4, %s15
          %p197 = scmp.lt.s32.totalorder %s196, 7
          %s198 = scalar_select %p197, %s196, 7
          %s199 = smul.addr %s198, 4
          %s200 = scalar_lea.vmem %s0, %s199
          %s201 = smul.u32 4, %s15
        $region36: #{tpu_custom_call.1} parent=31 // pred_fallthru
          _
      $region32: #{tpu_custom_call.1} parent=5 // pred_fallthru
        _
      %p202 = scmp.le.s32.totalorder 1, %s15
      %p203 = scmp.lt.s32.totalorder %s15, 3
      %p204 = pnand %p202, %p203
      %p205 = pneg %p204
      // Predicated region
      $region37: #{tpu_custom_call.1} parent=5 // pred_check
        _
      $region38: #{tpu_custom_call.1} parent=5 // pred_check_branch
        %207 = sbr.rel (%p204) target = $region40
      $region39: #{tpu_custom_call.1} parent=5 // pred_region
        %s208 = ssub.s32 %s15, 1
        // Predicated region
        $region41: #{tpu_custom_call.1} parent=39 // pred_check
          %p209 = pneg %p104
        $region42: #{tpu_custom_call.1} parent=39 // pred_check_branch
          %211 = sbr.rel (%p209) target = $region44
        $region43: #{tpu_custom_call.1} parent=39 // pred_region
          %213 = dma.done [#allocation3], 1024
        $region44: #{tpu_custom_call.1} parent=39 // pred_fallthru
          _
        %s214 = smul.u32 4, %s20
        %p215 = scmp.lt.s32.totalorder %s214, 7
        %s216 = scalar_select %p215, %s214, 7
        %s217 = smul.addr %s216, 4
        %s218 = scalar_lea.vmem %s0, %s217
        %p219 = pneg %p41
        %p220 = pneg %p38
        %p221 = pneg %p62
        %p222 = pneg %p59
        %p223 = pneg %p83
        %p224 = pneg %p80
        %p225 = pneg %p104
        %p226 = pneg %p101
        %p227 = pneg %p125
        %p228 = pneg %p122
        %p229 = pneg %p151
        %p230 = pneg %p148
        %s231 = sand.u32 %s138, 1
        %s232 = scalar_lea.sflag [#allocation4], %s231
        %s233 = sand.u32 %s138, 1
        %s234 = smul.addr %s233, 32
        %s235 = scalar_lea.vmem [#allocation5], %s234
        %s236 = smul.u32 4, %s20
        %p237 = scmp.lt.s32.totalorder %s236, 7
        %s238 = scalar_select %p237, %s236, 7
        %s239 = smul.addr %s238, 4
        %s240 = scalar_lea.vmem %s0, %s239
        %s241 = smul.u32 4, %s20
        %s242 = smul.u32 4, %s20
        %v244 = vld [vmem:[%s240] sm:$0xf]
        %v245 = vld [vmem:[%s240 + $0x4] sm:$0xf]
        %v246 = vld [vmem:[%s240 + $0x8] sm:$0xf]
        %v247 = vld [vmem:[%s240 + $0xc] sm:$0xf]
        %v248 = vld [vmem:[%s1] sm:$0xff]
        %v249 = vld [vmem:[%s1 + $0x8] sm:$0xff]
        %v250 = vld [vmem:[%s1 + $0x10] sm:$0xff]
        %v251 = vld [vmem:[%s1 + $0x18] sm:$0xff]
        %v256 = vunpack.c.l.b16 %v244
        %v257 = vunpack.c.l.b16 %v245
        %v258 = vunpack.c.l.b16 %v246
        %v259 = vunpack.c.l.b16 %v247
        %v260 = vpack.c.b16 %v257, %v256
        %v261 = vpack.c.b16 %v259, %v258
        %v266 = vunpack.c.l.b16 %v248
        %v267 = vunpack.c.h.b16 %v248
        %v268 = vunpack.c.l.b16 %v249
        %v269 = vunpack.c.h.b16 %v249
        %v270 = vunpack.c.l.b16 %v250
        %v271 = vunpack.c.h.b16 %v250
        %v272 = vunpack.c.l.b16 %v251
        %v273 = vunpack.c.h.b16 %v251
        %v274 = vpack.c.b16 %v268, %v266
        %v275 = vpack.c.b16 %v269, %v267
        %v276 = vpack.c.b16 %v272, %v270
        %v277 = vpack.c.b16 %v273, %v271
        %vm282 = vcmask 261120
        %v284 = vsel %vm282, %v260, 0
        %v287 = vsel %vm282, %v261, 0
        %289 = vmatpush.bf16.msra.mxu0 0
        %290 = vmatpush.bf16.msra.mxu0 0
        %291 = vmatpush.bf16.msra.mxu0 0
        %292 = vmatpush.bf16.msra.mxu0 0
        %293 = vmatpush.bf16.msra.mxu0 0
        %294 = vmatpush.bf16.msra.mxu0 0
        %295 = vmatpush.bf16.msra.mxu0 %v276
        %296 = vmatpush.bf16.msra.mxu0 %v274
        %297 = vmatmul.bf16.gmra.mxu0 %v284
        %v298 = vpop.f32.mrf.mxu0
        %v299 = vadd.f32 0.0, %v298
        %v300 = vpop.f32.mrf.mxu0
        %v301 = vadd.f32 0.0, %v300
        %302 = vmatmul.bf16.gmra.mxu0 %v287
        %v303 = vpop.f32.mrf.mxu0
        %v304 = vadd.f32 0.0, %v303
        %v305 = vpop.f32.mrf.mxu0
        %v306 = vadd.f32 0.0, %v305
        %307 = vdwg.mxu0
        %308 = vmatpush.bf16.msra.mxu0 0
        %309 = vmatpush.bf16.msra.mxu0 0
        %310 = vmatpush.bf16.msra.mxu0 0
        %311 = vmatpush.bf16.msra.mxu0 0
        %312 = vmatpush.bf16.msra.mxu0 0
        %313 = vmatpush.bf16.msra.mxu0 0
        %314 = vmatpush.bf16.msra.mxu0 %v277
        %315 = vmatpush.bf16.msra.mxu0 %v275
        %316 = vmatmul.bf16.gmra.mxu0 %v284
        %v317 = vpop.f32.mrf.mxu0
        %v318 = vadd.f32 0.0, %v317
        %v319 = vpop.f32.mrf.mxu0
        %v320 = vadd.f32 0.0, %v319
        %321 = vmatmul.bf16.gmra.mxu0 %v287
        %v322 = vpop.f32.mrf.mxu0
        %v323 = vadd.f32 0.0, %v322
        %v324 = vpop.f32.mrf.mxu0
        %v325 = vadd.f32 0.0, %v324
        %326 = vdwg.mxu0
        %v327 = vld [vmem:[%s2] sm:$0x1]
        %v329 = vperm.slane %v327, 0
        %v331 = vadd.f32 %v299, %v329
        %v332 = vadd.f32 %v301, %v329
        %v333 = vadd.f32 %v304, %v329
        %v334 = vadd.f32 %v306, %v329
        %v335 = vmax.f32 %v331, 0.0
        %v336 = vmax.f32 %v332, 0.0
        %v337 = vmax.f32 %v333, 0.0
        %v338 = vmax.f32 %v334, 0.0
        %v339 = vpack.c.bf16 %v336, %v335
        %v340 = vpack.c.bf16 %v338, %v337
        %v341 = vld [vmem:[#allocation2] sm:$0xf]
        %v342 = vld [vmem:[#allocation2 + $0x4] sm:$0xf]
        %v343 = vld [vmem:[#allocation2 + $0x8] sm:$0xf]
        %v344 = vld [vmem:[#allocation2 + $0xc] sm:$0xf]
        %v345 = vld [vmem:[#allocation2 + $0x10] sm:$0xf]
        %v346 = vld [vmem:[#allocation2 + $0x14] sm:$0xf]
        %v347 = vld [vmem:[#allocation2 + $0x18] sm:$0xf]
        %v348 = vld [vmem:[#allocation2 + $0x1c] sm:$0xf]
        %v349 = vld [vmem:[#allocation2 + $0x20] sm:$0xf]
        %v350 = vld [vmem:[#allocation2 + $0x24] sm:$0xf]
        %v351 = vld [vmem:[#allocation2 + $0x28] sm:$0xf]
        %v352 = vld [vmem:[#allocation2 + $0x2c] sm:$0xf]
        %v353 = vld [vmem:[#allocation2 + $0x30] sm:$0xf]
        %v354 = vld [vmem:[#allocation2 + $0x34] sm:$0xf]
        %v355 = vld [vmem:[#allocation2 + $0x38] sm:$0xf]
        %v356 = vld [vmem:[#allocation2 + $0x3c] sm:$0xf]
        %v373 = vunpack.c.l.b16 %v341
        %v374 = vunpack.c.l.b16 %v342
        %v375 = vunpack.c.l.b16 %v343
        %v376 = vunpack.c.l.b16 %v344
        %v377 = vunpack.c.l.b16 %v345
        %v378 = vunpack.c.l.b16 %v346
        %v379 = vunpack.c.l.b16 %v347
        %v380 = vunpack.c.l.b16 %v348
        %v381 = vunpack.c.l.b16 %v349
        %v382 = vunpack.c.l.b16 %v350
        %v383 = vunpack.c.l.b16 %v351
        %v384 = vunpack.c.l.b16 %v352
        %v385 = vunpack.c.l.b16 %v353
        %v386 = vunpack.c.l.b16 %v354
        %v387 = vunpack.c.l.b16 %v355
        %v388 = vunpack.c.l.b16 %v356
        %v389 = vpack.c.b16 %v374, %v373
        %v390 = vpack.c.b16 %v376, %v375
        %v391 = vpack.c.b16 %v378, %v377
        %v392 = vpack.c.b16 %v380, %v379
        %v393 = vpack.c.b16 %v382, %v381
        %v394 = vpack.c.b16 %v384, %v383
        %v395 = vpack.c.b16 %v386, %v385
        %v396 = vpack.c.b16 %v388, %v387
        %405 = vmatpush.bf16.msra.mxu0 %v396
        %406 = vmatpush.bf16.msra.mxu0 %v395
        %407 = vmatpush.bf16.msra.mxu0 %v394
        %408 = vmatpush.bf16.msra.mxu0 %v393
        %409 = vmatpush.bf16.msra.mxu0 %v392
        %410 = vmatpush.bf16.msra.mxu0 %v391
        %411 = vmatpush.bf16.msra.mxu0 %v390
        %412 = vmatpush.bf16.msra.mxu0 %v389
        %413 = vmatmul.bf16.gmra.mxu0 %v339
        %v414 = vpop.f32.mrf.mxu0
        %v415 = vadd.f32 %v318, %v414
        %v416 = vpop.f32.mrf.mxu0
        %v417 = vadd.f32 %v320, %v416
        %418 = vmatmul.bf16.gmra.mxu0 %v340
        %v419 = vpop.f32.mrf.mxu0
        %v420 = vadd.f32 %v323, %v419
        %v421 = vpop.f32.mrf.mxu0
        %v422 = vadd.f32 %v325, %v421
        %423 = vdwg.mxu0
        %v424 = vld [vmem:[%s4] sm:$0x1]
        %v426 = vperm.slane %v424, 0
        %v428 = vadd.f32 %v415, %v426
        %v429 = vadd.f32 %v417, %v426
        %v430 = vadd.f32 %v420, %v426
        %v431 = vadd.f32 %v422, %v426
        %432 = vst [vmem:[%s235] sm:$0xff] %v428
        %433 = vst [vmem:[%s235 + $0x8] sm:$0xff] %v429
        %434 = vst [vmem:[%s235 + $0x10] sm:$0xff] %v430
        %435 = vst [vmem:[%s235 + $0x18] sm:$0xff] %v431
        %s436 = sand.u32 %s138, 1
        %s437 = scalar_lea.sflag [#allocation4], %s436
        %s438 = sand.u32 %s138, 1
        %s439 = smul.addr %s438, 32
        %s440 = scalar_lea.vmem [#allocation5], %s439
        // Predicated region
        $region45: #{tpu_custom_call.1} parent=39 // pred_check
          %p441 = pneg %p148
        $region46: #{tpu_custom_call.1} parent=39 // pred_check_branch
          %443 = sbr.rel (%p441) target = $region48
        $region47: #{tpu_custom_call.1} parent=39 // pred_region
          %s444 = smul.u32 4, %s20
          %446 = vsyncadd %s437, 0
          %s447 = smul.addr %s444, 8
          %s448 = scalar_lea.hbm %s5, %s447
          %s449 = sshll.u32 %s440, 4
          %s450 = int_to_ptr.vmem [resolvable:$true] %s449
          %s451 = sshll.u32 %s448, 4
          %s452 = int_to_ptr.hbm [resolvable:$true] %s451
          %457 = dma.vmem_to_hbm [thread:$0]  %s450, 512, %s452, %s437, 128, 128, 8
        $region48: #{tpu_custom_call.1} parent=39 // pred_fallthru
          _
      $region40: #{tpu_custom_call.1} parent=5 // pred_fallthru
        _
      %p458 = scmp.le.s32.totalorder 2, %s15
      // Predicated region
      $region49: #{tpu_custom_call.1} parent=5 // pred_check
        %p459 = pneg %p458
      $region50: #{tpu_custom_call.1} parent=5 // pred_check_branch
        %461 = sbr.rel (%p459) target = $region52
      $region51: #{tpu_custom_call.1} parent=5 // pred_region
        %s462 = ssub.s32 %s15, 2
        // Predicated region
        $region53: #{tpu_custom_call.1} parent=51 // pred_check
          %p463 = pneg %p154
        $region54: #{tpu_custom_call.1} parent=51 // pred_check_branch
          %465 = sbr.rel (%p463) target = $region56
        $region55: #{tpu_custom_call.1} parent=51 // pred_region
          %s466 = sand.u32 %s139, 1
          %s467 = scalar_lea.sflag [#allocation4], %s466
          %s468 = sand.u32 %s139, 1
          %s469 = smul.addr %s468, 32
          %s470 = scalar_lea.vmem [#allocation5], %s469
          %472 = dma.done %s467, 512
        $region56: #{tpu_custom_call.1} parent=51 // pred_fallthru
          _
      $region52: #{tpu_custom_call.1} parent=5 // pred_fallthru
        _
    $region6: #{tpu_custom_call.1} parent=1 // loop_footer
      %s19 = sadd.s32 1, %s15
    $region7: #{tpu_custom_call.1} parent=1 // loop_footer_branch
      %14 = sbr.rel target = $region3
    $region8: #{tpu_custom_call.1} parent=1 // loop_exit
      _
    %473 = vsyncpa [#allocation3], 1
    %s474 = scalar_lea.sflag [#allocation3], 1
    %475 = vsyncpa %s474, 1
    %476 = vsyncpa [#allocation4], 1
    %s477 = scalar_lea.sflag [#allocation4], 1
    %478 = vsyncpa %s477, 1

</llo_original>
